<compile_context>
chip_gen: v5e
topology: v5e:2x2
jax: 0.10.0
libtpu: 0.0.40
codegen_flags: <defaults>
</compile_context>

<pallas_src>
import math
from functools import partial

import numpy as np
import jax
import jax.numpy as jnp
from jax import lax
from jax.experimental import pallas as pl
from jax.experimental.pallas import tpu as pltpu


# --------------------------------------------------------------------------
# Per-generation tiling constants
# --------------------------------------------------------------------------

def _chip_config():
    """(row_tile, scoped_vmem_limit_bytes) derived from physical VMEM size."""
    vmem_cap = None
    try:
        vmem_cap = pltpu.get_tpu_info().vmem_capacity_bytes
    except Exception:
        vmem_cap = None
    if vmem_cap is not None and vmem_cap >= 128 * 1024 * 1024:
        # v5e / v6e: 128 MiB VMEM -> big row tiles, generous scoped limit.
        return 1024, 96 * 1024 * 1024
    # v7x (64 MiB VMEM) or unknown: stay conservative.
    return 512, 48 * 1024 * 1024


_TM, _VMEM_LIMIT = _chip_config()


# --------------------------------------------------------------------------
# In-kernel helpers
# --------------------------------------------------------------------------

def _layernorm_f32(x, g, b, eps=1e-5):
    """LayerNorm in f32; g/b are (1, E) and broadcast over rows."""
    inv_e = 1.0 / x.shape[-1]
    mu = jnp.sum(x, axis=-1, keepdims=True) * inv_e
    xc = x - mu
    var = jnp.sum(xc * xc, axis=-1, keepdims=True) * inv_e
    return xc * lax.rsqrt(var + eps) * g.astype(jnp.float32) + b.astype(jnp.float32)


# --------------------------------------------------------------------------
# Pallas kernels
# --------------------------------------------------------------------------

def _make_linear_kernel(ln):
    """(optional LayerNorm) -> matmul (bf16 weights, f32 accumulate) -> +bias."""

    def kernel(*refs):
        if ln:
            x_ref, g_ref, bln_ref, w_ref, b_ref, o_ref = refs
        else:
            x_ref, w_ref, b_ref, o_ref = refs
        x = x_ref[...].astype(jnp.float32)
        if ln:
            x = _layernorm_f32(x, g_ref[...], bln_ref[...])
        y = jnp.dot(x.astype(jnp.bfloat16), w_ref[...],          # w is bf16 already
                    preferred_element_type=jnp.float32)
        y = y + b_ref[...].astype(jnp.float32)
        o_ref[...] = y.astype(o_ref.dtype)

    return kernel


def _transformer_block_kernel(x_ref, g1_ref, b1_ref, qkvw_ref, qkvb_ref,
                              projw_ref, projb_ref, g2_ref, b2_ref,
                              fc1w_ref, fc1b_ref, fc2w_ref, fc2b_ref,
                              o_ref, attn_acc, *, num_heads, scale):
    """One full timm Block per grid step (one batch element per step)."""
    x = x_ref[0].astype(jnp.float32)                               # (S, E)
    E = x.shape[-1]
    Dh = E // num_heads

    # ---- LN1 fused into qkv projection ------------------------------------
    xn = _layernorm_f32(x, g1_ref[...], b1_ref[...])
    qkv = jnp.dot(xn.astype(jnp.bfloat16), qkvw_ref[...],
                  preferred_element_type=jnp.float32) + qkvb_ref[...]   # (S, 3E)

    # ---- multi-head self-attention -----------------------------------------
    # Each head writes its (S, Dh) result into a lane slab of the (S, E) VMEM
    # scratch; no per-head concatenate, live ranges stay one head wide.
    # TODO(synk): for many-head configs, batch the score/PV matmuls over heads
    # via dot_general batch dims to amortize the sub-128-lane slice relayouts.
    for h in range(num_heads):                                     # static loop
        q = qkv[:, h * Dh:(h + 1) * Dh] * scale
        k = qkv[:, E + h * Dh:E + (h + 1) * Dh]
        v = qkv[:, 2 * E + h * Dh:2 * E + (h + 1) * Dh]

        s = lax.dot_general(q.astype(jnp.bfloat16), k.astype(jnp.bfloat16),
                            (((1,), (1,)), ((), ())),
                            preferred_element_type=jnp.float32)   # (S, S)
        s = s - jnp.max(s, axis=-1, keepdims=True)
        p = jnp.exp(s)                                             # f32 exp (v5e-safe)
        denom = jnp.sum(p, axis=-1, keepdims=True)                 # (S, 1)
        o = lax.dot_general(p.astype(jnp.bfloat16), v.astype(jnp.bfloat16),
                            (((1,), (0,)), ((), ())),
                            preferred_element_type=jnp.float32)   # (S, Dh)
        attn_acc[:, h * Dh:(h + 1) * Dh] = o * pl.reciprocal(denom, approx=True)

    # ---- output projection + residual --------------------------------------
    y = jnp.dot(attn_acc[...].astype(jnp.bfloat16), projw_ref[...],
                preferred_element_type=jnp.float32) + projb_ref[...] + x

    # ---- LN2 + MLP (GELU) + residual ----------------------------------------
    yn = _layernorm_f32(y, g2_ref[...], b2_ref[...])
    hdn = jnp.dot(yn.astype(jnp.bfloat16), fc1w_ref[...],
                  preferred_element_type=jnp.float32) + fc1b_ref[...]
    # TODO(synk): torch nn.GELU uses exact erf; tanh approximation here (~1e-3).
    hdn = jax.nn.gelu(hdn, approximate=True)
    out = jnp.dot(hdn.astype(jnp.bfloat16), fc2w_ref[...],
                  preferred_element_type=jnp.float32) + fc2b_ref[...] + y

    o_ref[0] = out.astype(o_ref.dtype)


# --------------------------------------------------------------------------
# pallas_call wrappers
# --------------------------------------------------------------------------

def pallas_fused_linear(x2d, w, b, *, ln_g=None, ln_b=None, tm=None):
    """y = LN?(x) @ w + b, row-tiled over x2d.  `w` must already be bf16."""
    M, K = x2d.shape
    N = w.shape[1]
    ln = ln_g is not None
    tm = _TM if tm is None else tm
    tm = M if M <= tm else tm                     # full block for small M
    grid = (pl.cdiv(M, tm),)

    args = [x2d]
    in_specs = [pl.BlockSpec((tm, K), lambda i: (i, 0))]
    if ln:
        args += [ln_g.reshape(1, K), ln_b.reshape(1, K)]
        in_specs += [pl.BlockSpec((1, K), lambda i: (0, 0)),
                     pl.BlockSpec((1, K), lambda i: (0, 0))]
    args += [w, b.reshape(1, N)]
    # TODO(synk): the grid-invariant weight/bias specs could be single-buffered
    # via pipeline_mode=pl.Buffered(1); left at the default pending confirmed
    # support in the top-level pallas_call pipeline on this JAX build.
    in_specs += [pl.BlockSpec((K, N), lambda i: (0, 0)),   # resident bf16 weight
                 pl.BlockSpec((1, N), lambda i: (0, 0))]

    return pl.pallas_call(
        _make_linear_kernel(ln),
        grid=grid,
        out_shape=jax.ShapeDtypeStruct((M, N), x2d.dtype),
        in_specs=in_specs,
        out_specs=pl.BlockSpec((tm, N), lambda i: (i, 0)),
        compiler_params=pltpu.CompilerParams(
            dimension_semantics=("parallel",),
            vmem_limit_bytes=_VMEM_LIMIT),
    )(*args)


def pallas_transformer_block(x, blk, num_heads):
    """One fused transformer block; grid over batch, block weights VMEM-resident."""
    B, S, E = x.shape
    E3 = blk["qkv_w"].shape[1]
    Hm = blk["fc1_w"].shape[1]
    Dh = E // num_heads
    scale = 1.0 / math.sqrt(Dh)

    def res_spec(shape):
        return pl.BlockSpec(shape, lambda b: (0,) * len(shape))

    return pl.pallas_call(
        partial(_transformer_block_kernel, num_heads=num_heads, scale=scale),
        grid=(B,),
        out_shape=jax.ShapeDtypeStruct((B, S, E), x.dtype),
        in_specs=[
            pl.BlockSpec((1, S, E), lambda b: (b, 0, 0)),   # activations
            res_spec((1, E)), res_spec((1, E)),             # ln1 gamma/beta
            res_spec((E, E3)), res_spec((1, E3)),           # qkv  w (bf16) / b
            res_spec((E, E)), res_spec((1, E)),             # proj w (bf16) / b
            res_spec((1, E)), res_spec((1, E)),             # ln2 gamma/beta
            res_spec((E, Hm)), res_spec((1, Hm)),           # fc1  w (bf16) / b
            res_spec((Hm, E)), res_spec((1, E)),            # fc2  w (bf16) / b
        ],
        out_specs=pl.BlockSpec((1, S, E), lambda b: (b, 0, 0)),
        scratch_shapes=[pltpu.VMEM((S, E), jnp.float32)],   # attention output slab
        compiler_params=pltpu.CompilerParams(
            dimension_semantics=("parallel",),              # B>=2 feeds both v7x TCs
            vmem_limit_bytes=_VMEM_LIMIT),
    )(x,
      blk["ln1_g"].reshape(1, E), blk["ln1_b"].reshape(1, E),
      blk["qkv_w"], blk["qkv_b"].reshape(1, E3),
      blk["proj_w"], blk["proj_b"].reshape(1, E),
      blk["ln2_g"].reshape(1, E), blk["ln2_b"].reshape(1, E),
      blk["fc1_w"], blk["fc1_b"].reshape(1, Hm),
      blk["fc2_w"], blk["fc2_b"].reshape(1, E))


# --------------------------------------------------------------------------
# Parameter init (matches shapes / init scheme of MAEDecoder.__init__)
# --------------------------------------------------------------------------

def _1d_sincos(embed_dim, pos):
    omega = np.arange(embed_dim // 2, dtype=np.float64)
    omega /= embed_dim / 2.0
    omega = 1.0 / 10000 ** omega
    out = np.einsum("m,d->md", pos.reshape(-1), omega)
    return np.concatenate([np.sin(out), np.cos(out)], axis=1)


def generate_2d_sincos_pos_embed(embed_dim, grid_size, cls_token=False):
    grid_h = np.arange(grid_size, dtype=np.float64)
    grid_w = np.arange(grid_size, dtype=np.float64)
    grid = np.meshgrid(grid_w, grid_h)          # w goes first (MAE convention)
    grid = np.stack(grid, axis=0).reshape([2, 1, grid_size, grid_size])
    emb_h = _1d_sincos(embed_dim // 2, grid[0])
    emb_w = _1d_sincos(embed_dim // 2, grid[1])
    pos = np.concatenate([emb_h, emb_w], axis=1)
    if cls_token:
        pos = np.concatenate([np.zeros([1, embed_dim]), pos], axis=0)
    return pos


def xavier_uniform(key, shape, fan_in, fan_out):
    limit = math.sqrt(6.0 / (fan_in + fan_out))
    return jax.random.uniform(key, shape, jnp.float32, -limit, limit)


def init_params(key, in_dim, embed_dim, depth, num_heads, num_patches,
                patch_size, mlp_ratio=4.0):
    hidden = int(embed_dim * mlp_ratio)
    pred_dim = patch_size ** 2 * 3
    ki = iter(jax.random.split(key, 4 + 4 * depth))

    params = {
        "embed_w": xavier_uniform(next(ki), (in_dim, embed_dim), in_dim, embed_dim),
        "embed_b": jnp.zeros((embed_dim,), jnp.float32),
        "mask_token": 0.02 * jax.random.normal(next(ki), (1, 1, embed_dim), jnp.float32),
        "pos_embed": jnp.asarray(
            generate_2d_sincos_pos_embed(embed_dim, int(num_patches ** 0.5),
                                         cls_token=True),
            dtype=jnp.float32)[None],                       # (1, P+1, E)
        "norm_g": jnp.ones((embed_dim,), jnp.float32),
        "norm_b": jnp.zeros((embed_dim,), jnp.float32),
        "pred_w": xavier_uniform(next(ki), (embed_dim, pred_dim), embed_dim, pred_dim),
        "pred_b": jnp.zeros((pred_dim,), jnp.float32),
        "blocks": [],
    }
    for _ in range(depth):
        blk = {
            "ln1_g": jnp.ones((embed_dim,), jnp.float32),
            "ln1_b": jnp.zeros((embed_dim,), jnp.float32),
            "qkv_w": xavier_uniform(next(ki), (embed_dim, 3 * embed_dim),
                                    embed_dim, 3 * embed_dim),
            "qkv_b": jnp.zeros((3 * embed_dim,), jnp.float32),
            "proj_w": xavier_uniform(next(ki), (embed_dim, embed_dim),
                                     embed_dim, embed_dim),
            "proj_b": jnp.zeros((embed_dim,), jnp.float32),
            "ln2_g": jnp.ones((embed_dim,), jnp.float32),
            "ln2_b": jnp.zeros((embed_dim,), jnp.float32),
            "fc1_w": xavier_uniform(next(ki), (embed_dim, hidden), embed_dim, hidden),
            "fc1_b": jnp.zeros((hidden,), jnp.float32),
            "fc2_w": xavier_uniform(next(ki), (hidden, embed_dim), hidden, embed_dim),
            "fc2_b": jnp.zeros((embed_dim,), jnp.float32),
        }
        params["blocks"].append(blk)
    return params


def prepare_params(params):
    """Pre-cast every matmul weight to bf16 ONCE (kept out of the kernels)."""
    p = dict(params)
    p["embed_w"] = params["embed_w"].astype(jnp.bfloat16)
    p["pred_w"] = params["pred_w"].astype(jnp.bfloat16)
    blocks = []
    for blk in params["blocks"]:
        nb = dict(blk)
        for k in ("qkv_w", "proj_w", "fc1_w", "fc2_w"):
            nb[k] = blk[k].astype(jnp.bfloat16)
        blocks.append(nb)
    p["blocks"] = blocks
    return p


# --------------------------------------------------------------------------
# MAEDecoder forward (glue in plain JAX, compute in Pallas kernels)
# --------------------------------------------------------------------------

def mae_decoder_forward(params, x, ids_restore, num_heads):
    """params must have been passed through prepare_params (bf16 weights)."""
    B, L, Din = x.shape
    E = params["embed_w"].shape[1]

    # decoder_embed
    x = pallas_fused_linear(x.reshape(B * L, Din),
                            params["embed_w"], params["embed_b"]).reshape(B, L, E)

    # append mask tokens and un-shuffle with ids_restore
    # TODO(synk): data-dependent per-batch gather kept as plain-JAX glue.
    num_masked = ids_restore.shape[1] + 1 - L
    mask_tokens = jnp.broadcast_to(params["mask_token"], (B, num_masked, E))
    x_ = jnp.concatenate([x[:, 1:, :], mask_tokens], axis=1)          # (B, P, E)
    idx = jnp.broadcast_to(ids_restore[:, :, None].astype(jnp.int32),
                           (B, ids_restore.shape[1], E))
    x_ = jnp.take_along_axis(x_, idx, axis=1)
    x = jnp.concatenate([x[:, :1, :], x_], axis=1)                    # (B, P+1, E)
    x = x + params["pos_embed"]

    # fused transformer blocks: one pallas_call per block, no intra-block
    # activation round trips to HBM.
    for blk in params["blocks"]:
        x = pallas_transformer_block(x, blk, num_heads)

    # final norm fused into prediction head
    S = x.shape[1]
    out = pallas_fused_linear(x.reshape(B * S, E), params["pred_w"], params["pred_b"],
                              ln_g=params["norm_g"], ln_b=params["norm_b"])
    out = out.reshape(B, S, -1)
    return out[:, 1:, :]                                              # drop cls


# --------------------------------------------------------------------------
# Demo
# --------------------------------------------------------------------------

if __name__ == "__main__":
    B = 2
    in_dim = 64          # encoder output dim
    embed_dim = 128      # decoder dim (lane-dense)
    depth = 2
    num_heads = 4        # Dh = 32
    num_patches = 16     # 4x4 grid
    patch_size = 4       # pred dim = 4*4*3 = 48
    len_keep = 4         # visible patches (mask ratio 0.75)

    key = jax.random.PRNGKey(0)
    kp, kx, kperm = jax.random.split(key, 3)

    params = prepare_params(
        init_params(kp, in_dim, embed_dim, depth, num_heads,
                    num_patches, patch_size))

    # x = [cls token + visible patch tokens] from the encoder
    x = jax.random.normal(kx, (B, 1 + len_keep, in_dim), jnp.float32)
    ids_restore = jnp.stack(
        [jax.random.permutation(k, num_patches)
         for k in jax.random.split(kperm, B)]).astype(jnp.int32)      # (B, 16)

    out = mae_decoder_forward(params, x, ids_restore, num_heads)
    out = jax.block_until_ready(out)
    assert out.shape == (B, num_patches, patch_size ** 2 * 3), out.shape
    assert jnp.all(jnp.isfinite(out))
    print("KERNEL_OK")
</pallas_src>

<mosaic_0001>
module attributes {stable_mosaic.version = 11 : i64} {
  func.func @kernel(%arg0: i32, %arg1: memref<10x64xf32, #tpu.memory_space<vmem>>, %arg2: memref<64x128xbf16, #tpu.memory_space<vmem>>, %arg3: memref<1x128xf32, #tpu.memory_space<vmem>>, %arg4: memref<10x128xf32, #tpu.memory_space<vmem>>) attributes {dimension_semantics = [#tpu.dimension_semantics<parallel>], iteration_bounds = array<i64: 1>, scalar_prefetch = 0 : i64, scratch_operands = 0 : i64, tpu.core_type = #tpu.core_type<tc>, window_params = [{transform_indices = @transform_0, window_bounds = array<i64: 10, 64>}, {pipeline_mode = #tpu.pipeline_mode<synchronous>, transform_indices = @transform_1, window_bounds = array<i64: 64, 128>}, {pipeline_mode = #tpu.pipeline_mode<synchronous>, transform_indices = @transform_2, window_bounds = array<i64: 1, 128>}, {transform_indices = @transform_3, window_bounds = array<i64: 10, 128>}]} {
    %c0 = arith.constant 0 : index
    %c0_0 = arith.constant 0 : index
    %0 = vector.load %arg1[%c0, %c0_0] : memref<10x64xf32, #tpu.memory_space<vmem>>, vector<10x64xf32>
    %1 = arith.truncf %0 : vector<10x64xf32> to vector<10x64xbf16>
    %c0_1 = arith.constant 0 : index
    %c0_2 = arith.constant 0 : index
    %2 = vector.load %arg2[%c0_1, %c0_2] : memref<64x128xbf16, #tpu.memory_space<vmem>>, vector<64x128xbf16>
    %cst = arith.constant dense<0.000000e+00> : vector<10x128xf32>
    %3 = tpu.matmul %1, %2, %cst {dimension_numbers = #tpu.dot_dimension_numbers<[1], [0], [0], [1], [0, 0, 1, 1], [], []>} : vector<10x64xbf16>, vector<64x128xbf16>, vector<10x128xf32> -> vector<10x128xf32>
    %c0_3 = arith.constant 0 : index
    %c0_4 = arith.constant 0 : index
    %4 = vector.load %arg3[%c0_3, %c0_4] : memref<1x128xf32, #tpu.memory_space<vmem>>, vector<1x128xf32>
    %5 = vector.broadcast %4 : vector<1x128xf32> to vector<10x128xf32>
    %6 = arith.addf %3, %5 : vector<10x128xf32>
    %c0_5 = arith.constant 0 : index
    %c0_6 = arith.constant 0 : index
    %7 = vector.load %arg4[%c0_5, %c0_6] : memref<10x128xf32, #tpu.memory_space<vmem>>, vector<10x128xf32>
    tpu.vector_store %arg4[%c0_5, %c0_6], %6 {strides = array<i32>} : memref<10x128xf32, #tpu.memory_space<vmem>>, vector<10x128xf32>,
    return
  }
  func.func @transform_0(%arg0: i32) -> (i32, i32) {
    %c0_i32 = arith.constant 0 : i32
    %c0_i32_0 = arith.constant 0 : i32
    return %arg0, %c0_i32 : i32, i32
  }
  func.func @transform_1(%arg0: i32) -> (i32, i32) {
    %c0_i32 = arith.constant 0 : i32
    %c0_i32_0 = arith.constant 0 : i32
    %c0_i32_1 = arith.constant 0 : i32
    return %c0_i32, %c0_i32_0 : i32, i32
  }
  func.func @transform_2(%arg0: i32) -> (i32, i32) {
    %c0_i32 = arith.constant 0 : i32
    %c0_i32_0 = arith.constant 0 : i32
    %c0_i32_1 = arith.constant 0 : i32
    return %c0_i32, %c0_i32_0 : i32, i32
  }
  func.func @transform_3(%arg0: i32) -> (i32, i32) {
    %c0_i32 = arith.constant 0 : i32
    %c0_i32_0 = arith.constant 0 : i32
    return %arg0, %c0_i32 : i32, i32
  }
}

</mosaic_0001>

<llo_original>
// kernel: tpu_custom_call.1
$region0: #{tpu_custom_call.1}
  #allocation0 [shape = 'u32[]', space=smem, size = 0x4, offset = 0x4, fixed_abs, tag = 'smem constant byte address 0x4 - core index']
  #allocation1 [shape = 'u32[72,128]{1,0:T(1,128)}', space=vmem, size = 0x9000, scoped, tag = 'internal scratch']
  %s0 = inlined_call_operand.hbm [shape: f32[10,64], index: 0, kind: input, shape index: {}]
  %s1 = inlined_call_operand.hbm [shape: bf16[64,128], index: 1, kind: input, shape index: {}]
  %s2 = inlined_call_operand.vmem [shape: f32[1,128], index: 2, kind: input, shape index: {}]
  %s3 = inlined_call_operand.hbm [shape: f32[10,128], index: 3, kind: output, shape index: {}]
  %s4 = sld [smem:[#allocation0]]
  $region30: #{tpu_custom_call.1} parent=0
    _
  %s6 = ssub.s32 1, %s4
  %s7 = scalar_select 0, %s6, %s4
  $region1: #{tpu_custom_call.1} parent=0
    #allocation2 [shape = 'u8[8192]{0}', space=vmem, size = 0x2000, scoped, tag = 'input window, operand 0, single buffered']
    #allocation3 [shape = 's32[1]{0}', space=sflag, size = 0x4, scoped, tag = 'scoped memory for tpu_custom_call.1']
    #allocation4 [shape = 's32[1]{0}', space=sflag, size = 0x4, scoped, tag = 'scoped memory for tpu_custom_call.1']
    #allocation5 [shape = 'u8[16384]{0}', space=vmem, size = 0x4000, scoped, tag = 'input window, operand 1, single buffered']
    #allocation6 [shape = 's32[1]{0}', space=sflag, size = 0x4, scoped, tag = 'scoped memory for tpu_custom_call.1']
    #allocation7 [shape = 'u8[8192]{0}', space=vmem, size = 0x2000, scoped, tag = 'output window, operand 0, single buffered']
    %8 = vsyncpa [#allocation3], 0
    %9 = vsyncpa [#allocation6], 0
    %10 = vsyncpa [#allocation4], 0
    // Predicated region
    $region2: #{tpu_custom_call.1} parent=1 // pred_check
      _
    $region3: #{tpu_custom_call.1} parent=1 // pred_check_branch
      %12 = sbr.rel (0) target = $region5
    $region4: #{tpu_custom_call.1} parent=1 // pred_region
      %14 = vsyncadd [#allocation3], 0
      %s15 = sshll.u32 %s0, 4
      %s16 = int_to_ptr.hbm [resolvable:$true] %s15
      %s17 = sshll.u32 [#allocation2], 4
      %s18 = int_to_ptr.vmem [resolvable:$true] %s17
      %23 = dma.hbm_to_vmem [thread:$0]  %s16, 256, %s18, [#allocation3], 128, 128, 8
    $region5: #{tpu_custom_call.1} parent=1 // pred_fallthru
      _
    // Predicated region
    $region6: #{tpu_custom_call.1} parent=1 // pred_check
      _
    $region7: #{tpu_custom_call.1} parent=1 // pred_check_branch
      %25 = sbr.rel (0) target = $region9
    $region8: #{tpu_custom_call.1} parent=1 // pred_region
      %27 = vsyncadd [#allocation6], 0
      %s28 = sshll.u32 %s1, 4
      %s29 = int_to_ptr.hbm [resolvable:$true] %s28
      %s30 = sshll.u32 [#allocation5], 4
      %s31 = int_to_ptr.vmem [resolvable:$true] %s30
      %36 = dma.hbm_to_vmem [thread:$0]  %s29, 512, %s31, [#allocation6], 64, 64, 4
    $region9: #{tpu_custom_call.1} parent=1 // pred_fallthru
      _
    // Predicated region
    $region10: #{tpu_custom_call.1} parent=1 // pred_check
      _
    $region11: #{tpu_custom_call.1} parent=1 // pred_check_branch
      %38 = sbr.rel (0) target = $region13
    $region12: #{tpu_custom_call.1} parent=1 // pred_region
      _
    $region13: #{tpu_custom_call.1} parent=1 // pred_fallthru
      _
    // Predicated region
    $region14: #{tpu_custom_call.1} parent=1 // pred_check
      _
    $region15: #{tpu_custom_call.1} parent=1 // pred_check_branch
      %40 = sbr.rel (0) target = $region17
    $region16: #{tpu_custom_call.1} parent=1 // pred_region
      %42 = dma.done [#allocation3], 256
    $region17: #{tpu_custom_call.1} parent=1 // pred_fallthru
      _
    // Predicated region
    $region18: #{tpu_custom_call.1} parent=1 // pred_check
      _
    $region19: #{tpu_custom_call.1} parent=1 // pred_check_branch
      %44 = sbr.rel (0) target = $region21
    $region20: #{tpu_custom_call.1} parent=1 // pred_region
      %46 = dma.done [#allocation6], 512
    $region21: #{tpu_custom_call.1} parent=1 // pred_fallthru
      _
    %v48 = vld [vmem:[#allocation2] sm:$0xff]
    %v49 = vld [vmem:[#allocation2 + $0x8] sm:$0x3]
    %v50 = vpack.c.bf16 %v49, %v48
    %v51 = vld [vmem:[#allocation5] sm:$0xf]
    %v52 = vld [vmem:[#allocation5 + $0x4] sm:$0xf]
    %v53 = vld [vmem:[#allocation5 + $0x8] sm:$0xf]
    %v54 = vld [vmem:[#allocation5 + $0xc] sm:$0xf]
    %v55 = vld [vmem:[#allocation5 + $0x10] sm:$0xf]
    %v56 = vld [vmem:[#allocation5 + $0x14] sm:$0xf]
    %v57 = vld [vmem:[#allocation5 + $0x18] sm:$0xf]
    %v58 = vld [vmem:[#allocation5 + $0x1c] sm:$0xf]
    %v59 = vld [vmem:[%s2] sm:$0x1]
    %v61 = vperm.slane %v59, 0
    %v71 = vunpack.c.l.b16 %v51
    %v72 = vunpack.c.l.b16 %v52
    %v73 = vunpack.c.l.b16 %v53
    %v74 = vunpack.c.l.b16 %v54
    %v75 = vunpack.c.l.b16 %v55
    %v76 = vunpack.c.l.b16 %v56
    %v77 = vunpack.c.l.b16 %v57
    %v78 = vunpack.c.l.b16 %v58
    %v79 = vpack.c.b16 %v72, %v71
    %v80 = vpack.c.b16 %v74, %v73
    %v81 = vpack.c.b16 %v76, %v75
    %v82 = vpack.c.b16 %v78, %v77
    %vm87 = vcmask 523264
    %v89 = vsel %vm87, %v50, 0
    %91 = vmatpush.bf16.msra.mxu0 0
    %92 = vmatpush.bf16.msra.mxu0 0
    %93 = vmatpush.bf16.msra.mxu0 0
    %94 = vmatpush.bf16.msra.mxu0 0
    %95 = vmatpush.bf16.msra.mxu0 %v82
    %96 = vmatpush.bf16.msra.mxu0 %v81
    %97 = vmatpush.bf16.msra.mxu0 %v80
    %98 = vmatpush.bf16.msra.mxu0 %v79
    %99 = vmatmul.bf16.gmra.mxu0 %v89
    %v100 = vpop.f32.mrf.mxu0
    %v101 = vadd.f32 %v61, %v100
    %v102 = vpop.f32.mrf.mxu0
    %v103 = vadd.f32 %v61, %v102
    %104 = vdwg.mxu0
    %105 = vst [vmem:[#allocation7] sm:$0xff] %v101
    %106 = vst [vmem:[#allocation7 + $0x8] sm:$0x3] %v103
    // Predicated region
    $region22: #{tpu_custom_call.1} parent=1 // pred_check
      _
    $region23: #{tpu_custom_call.1} parent=1 // pred_check_branch
      %108 = sbr.rel (0) target = $region25
    $region24: #{tpu_custom_call.1} parent=1 // pred_region
      %110 = vsyncadd [#allocation4], 0
      %s111 = sshll.u32 [#allocation7], 4
      %s112 = int_to_ptr.vmem [resolvable:$true] %s111
      %s113 = sshll.u32 %s3, 4
      %s114 = int_to_ptr.hbm [resolvable:$true] %s113
      %119 = dma.vmem_to_hbm [thread:$0]  %s112, 256, %s114, [#allocation4], 128, 128, 8
    $region25: #{tpu_custom_call.1} parent=1 // pred_fallthru
      _
    // Predicated region
    $region26: #{tpu_custom_call.1} parent=1 // pred_check
      _
    $region27: #{tpu_custom_call.1} parent=1 // pred_check_branch
      %121 = sbr.rel (0) target = $region29
    $region28: #{tpu_custom_call.1} parent=1 // pred_region
      %123 = dma.done [#allocation4], 256
    $region29: #{tpu_custom_call.1} parent=1 // pred_fallthru
      _
    %124 = vsyncpa [#allocation3], 1
    %125 = vsyncpa [#allocation6], 1
    %126 = vsyncpa [#allocation4], 1

</llo_original>
